<compile_context>
chip_gen: v6e
topology: v6e:2x2x1
jax: 0.10.0
libtpu: 0.0.40
codegen_flags: <defaults>
</compile_context>

<pallas_src>
import functools

import jax
import jax.numpy as jnp
from jax.experimental import pallas as pl
from jax.experimental.pallas import tpu as pltpu

_LANE = 128


def _round_up(x, m):
    return (x + m - 1) // m * m


def _dice_reduce_kernel(pred_ref, tgt_ref, inter_ref, psum_ref, tcnt_ref, *,
                        class_num, tile_n, hw_valid, needs_mask):
    """Per-tile softmax over classes + per-class reductions.

    pred_ref : (1, C, TN) logits tile (native dtype, upcast in-kernel)
    tgt_ref  : (1, 1, TN) i32 class indices tile
    inter_ref: (1, C, 1)  f32  sum_px onehot_c * softmax_c   (accumulated)
    psum_ref : (1, C, 1)  f32  sum_px softmax_c              (accumulated)
    tcnt_ref : (1, C, 1)  f32  sum_px onehot_c (= bincount)  (accumulated)
    """
    i = pl.program_id(1)

    @pl.when(i == 0)
    def _():
        inter_ref[...] = jnp.zeros_like(inter_ref)
        psum_ref[...] = jnp.zeros_like(psum_ref)
        tcnt_ref[...] = jnp.zeros_like(tcnt_ref)

    logits = pred_ref[...].astype(jnp.float32)             # (1, C, TN)
    # Softmax over the class (sublane) axis, per pixel (lane).
    m = jnp.max(logits, axis=1, keepdims=True)             # (1, 1, TN)
    e = jnp.exp(logits - m)                                 # (1, C, TN)
    s = jnp.sum(e, axis=1, keepdims=True)                   # (1, 1, TN)
    p = e * pl.reciprocal(s)                                # 1 recip + C muls

    # one-hot(target) via implicit broadcast (no materialized broadcast_to)
    class_ids = jax.lax.broadcasted_iota(jnp.int32, (1, class_num, 1), 1)
    onehot = (tgt_ref[...] == class_ids).astype(jnp.float32)    # (1, C, TN)

    if needs_mask:  # static: only emitted when HW was padded to a TN multiple
        lane = jax.lax.broadcasted_iota(jnp.int32, (1, 1, tile_n), 2)
        valid = (i * tile_n + lane) < hw_valid
        p = jnp.where(valid, p, 0.0)
        onehot = jnp.where(valid, onehot, 0.0)

    inter_ref[...] += jnp.sum(onehot * p, axis=2, keepdims=True)
    psum_ref[...] += jnp.sum(p, axis=2, keepdims=True)
    tcnt_ref[...] += jnp.sum(onehot, axis=2, keepdims=True)


@functools.partial(jax.jit, static_argnames=("class_num", "smooth"))
def weighted_dice_loss(pred_nchw, target_bhw, *, class_num, smooth=1.0):
    B, C, H, W = pred_nchw.shape
    assert C == class_num
    HW = H * W

    # --- tile-size selection (per-generation safe) --------------------------
    # Pure streaming/reduction kernel (no MXU) -> HBM-bandwidth bound.  Use
    # the largest lane tile a ~2 MiB pred tile allows (double-buffered this is
    # ~4-5 MiB incl. target: well inside the 32 MiB default scoped VMEM on
    # v5e/v6e and on v7x's 64 MiB part), capped at 32768 lanes.
    budget_tn = max(_LANE, ((2 * 1024 * 1024) // (C * 4)) // _LANE * _LANE)
    TN = min(budget_tn, _round_up(HW, _LANE), 32768)
    HW_pad = _round_up(HW, TN)
    needs_mask = HW_pad != HW

    # --- layout: no transpose, no f32 upcast in HBM -------------------------
    pred_bcn = pred_nchw.reshape(B, C, HW)          # free reshape, native dtype
    tgt_b1n = target_bhw.reshape(B, 1, HW).astype(jnp.int32)
    if needs_mask:
        # TODO(synk): padding costs one extra HBM pass over pred; an OOB-safe
        # masked tail tile would avoid it.
        pred_bcn = jnp.pad(pred_bcn, ((0, 0), (0, 0), (0, HW_pad - HW)))
        tgt_b1n = jnp.pad(tgt_b1n, ((0, 0), (0, 0), (0, HW_pad - HW)))

    kernel = functools.partial(
        _dice_reduce_kernel, class_num=C, tile_n=TN, hw_valid=HW,
        needs_mask=needs_mask)

    n_pix = B * HW
    cost = pl.CostEstimate(
        flops=8 * C * n_pix,
        transcendentals=C * n_pix,
        bytes_accessed=int(pred_nchw.size) * pred_nchw.dtype.itemsize
        + n_pix * 4 + 3 * B * C * 4)

    out_shapes = tuple(
        jax.ShapeDtypeStruct((B, C, 1), jnp.float32) for _ in range(3))

    inter, psum, tcnt = pl.pallas_call(
        kernel,
        out_shape=out_shapes,
        grid_spec=pltpu.PrefetchScalarGridSpec(
            num_scalar_prefetch=0,
            grid=(B, HW_pad // TN),
            in_specs=[
                pl.BlockSpec((1, C, TN), lambda b, i: (b, 0, i)),
                pl.BlockSpec((1, 1, TN), lambda b, i: (b, 0, i)),
            ],
            out_specs=[
                pl.BlockSpec((1, C, 1), lambda b, i: (b, 0, 0)),
                pl.BlockSpec((1, C, 1), lambda b, i: (b, 0, 0)),
                pl.BlockSpec((1, C, 1), lambda b, i: (b, 0, 0)),
            ],
        ),
        compiler_params=pltpu.CompilerParams(
            dimension_semantics=("parallel", "arbitrary")),
        cost_estimate=cost,
    )(pred_bcn, tgt_b1n)

    # Reduce the per-batch (per-core on v7x) partial sums.
    inter = jnp.sum(inter, axis=0).reshape(C)
    psum = jnp.sum(psum, axis=0).reshape(C)
    tcnt = jnp.sum(tcnt, axis=0).reshape(C)

    # --- tiny C-sized glue: class weights (get_weight) + dice formula -------
    denom = jnp.where(tcnt != 0, tcnt, jnp.float32(1e10))
    alpha = 1.0 / denom
    weights = alpha / jnp.sum(alpha)                 # alpha_norm

    intersection = weights * inter                   # w_c * sum(true_c*pred_c)
    union = weights * (tcnt + psum)                  # w_c*(sum true_c + sum pred_c)
    dice_loss = 1.0 - (2.0 * intersection + smooth) / (union + smooth)
    return jnp.mean(dice_loss)                       # total_loss / class_num


def _reference_loss(pred, target, class_num, smooth=1.0):
    """Pure-JAX reference mirroring the PyTorch module (for verification)."""
    counts = jnp.bincount(target.reshape(-1), length=class_num).astype(jnp.float32)
    denom = jnp.where(counts != 0, counts, 1e10)
    alpha = 1.0 / denom
    w = alpha / alpha.sum()                                     # (C,)
    p = jax.nn.softmax(pred.astype(jnp.float32), axis=1)        # (B,C,H,W)
    oh = jax.nn.one_hot(target, class_num, dtype=jnp.float32)   # (B,H,W,C)
    oh = jnp.transpose(oh, (0, 3, 1, 2))                        # (B,C,H,W)
    total = 0.0
    for c in range(class_num):
        inter = jnp.sum(w[c] * (oh[:, c] * p[:, c]))
        union = jnp.sum(w[c] * oh[:, c]) + jnp.sum(w[c] * p[:, c])
        total = total + (1.0 - (2.0 * inter + smooth) / (union + smooth))
    return total / class_num


if __name__ == "__main__":
    key = jax.random.PRNGKey(0)

    # Case 1: even shapes (no tail masking), matching the module's NCHW layout.
    B, C, H, W = 2, 4, 16, 16
    kp, kt, key = jax.random.split(key, 3)
    pred = jax.random.normal(kp, (B, C, H, W), dtype=jnp.float32)
    target = jax.random.randint(kt, (B, H, W), 0, C, dtype=jnp.int32)
    loss = weighted_dice_loss(pred, target, class_num=C, smooth=1.0)
    jax.block_until_ready(loss)
    ref = _reference_loss(pred, target, C, smooth=1.0)
    assert jnp.allclose(loss, ref, rtol=1e-5, atol=1e-5), (loss, ref)

    # Case 2: ragged spatial size exercises the padded / masked tail tile.
    B2, C2, H2, W2 = 2, 5, 13, 11
    kp2, kt2 = jax.random.split(key)
    pred2 = jax.random.normal(kp2, (B2, C2, H2, W2), dtype=jnp.float32)
    target2 = jax.random.randint(kt2, (B2, H2, W2), 0, C2, dtype=jnp.int32)
    loss2 = weighted_dice_loss(pred2, target2, class_num=C2, smooth=1.0)
    jax.block_until_ready(loss2)
    ref2 = _reference_loss(pred2, target2, C2, smooth=1.0)
    assert jnp.allclose(loss2, ref2, rtol=1e-5, atol=1e-5), (loss2, ref2)

    print("KERNEL_OK")
</pallas_src>

<mosaic_0001>
module attributes {stable_mosaic.version = 11 : i64} {
  func.func @_dice_reduce_kernel(%arg0: i32, %arg1: i32, %arg2: memref<1x4x256xf32, #tpu.memory_space<vmem>>, %arg3: memref<1x1x256xi32, #tpu.memory_space<vmem>>, %arg4: memref<1x4x1xf32, #tpu.memory_space<vmem>>, %arg5: memref<1x4x1xf32, #tpu.memory_space<vmem>>, %arg6: memref<1x4x1xf32, #tpu.memory_space<vmem>>) attributes {dimension_semantics = [#tpu.dimension_semantics<parallel>, #tpu.dimension_semantics<arbitrary>], iteration_bounds = array<i64: 2, 1>, scalar_prefetch = 0 : i64, scratch_operands = 0 : i64, tpu.core_type = #tpu.core_type<tc>, window_params = [{transform_indices = @transform_0, window_bounds = array<i64: 1, 4, 256>}, {transform_indices = @transform_1, window_bounds = array<i64: 1, 1, 256>}, {transform_indices = @transform_2, window_bounds = array<i64: 1, 4, 1>}, {transform_indices = @transform_3, window_bounds = array<i64: 1, 4, 1>}, {transform_indices = @transform_4, window_bounds = array<i64: 1, 4, 1>}]} {
    %c0_i32 = arith.constant 0 : i32
    %0 = arith.cmpi eq, %arg1, %c0_i32 : i32
    %1 = arith.extui %0 : i1 to i32
    %c0_i32_0 = arith.constant 0 : i32
    %2 = arith.cmpi ne, %1, %c0_i32_0 : i32
    scf.if %2 {
      %cst_28 = arith.constant 0.000000e+00 : f32
      %37 = vector.broadcast %cst_28 : f32 to vector<1x4x1xf32>
      %c0_29 = arith.constant 0 : index
      %c0_30 = arith.constant 0 : index
      %c0_31 = arith.constant 0 : index
      %38 = vector.load %arg4[%c0_29, %c0_30, %c0_31] : memref<1x4x1xf32, #tpu.memory_space<vmem>>, vector<1x4x1xf32>
      tpu.vector_store %arg4[%c0_29, %c0_30, %c0_31], %37 {strides = array<i32>} : memref<1x4x1xf32, #tpu.memory_space<vmem>>, vector<1x4x1xf32>,
      %cst_32 = arith.constant 0.000000e+00 : f32
      %39 = vector.broadcast %cst_32 : f32 to vector<1x4x1xf32>
      %c0_33 = arith.constant 0 : index
      %c0_34 = arith.constant 0 : index
      %c0_35 = arith.constant 0 : index
      %40 = vector.load %arg5[%c0_33, %c0_34, %c0_35] : memref<1x4x1xf32, #tpu.memory_space<vmem>>, vector<1x4x1xf32>
      tpu.vector_store %arg5[%c0_33, %c0_34, %c0_35], %39 {strides = array<i32>} : memref<1x4x1xf32, #tpu.memory_space<vmem>>, vector<1x4x1xf32>,
      %cst_36 = arith.constant 0.000000e+00 : f32
      %41 = vector.broadcast %cst_36 : f32 to vector<1x4x1xf32>
      %c0_37 = arith.constant 0 : index
      %c0_38 = arith.constant 0 : index
      %c0_39 = arith.constant 0 : index
      %42 = vector.load %arg6[%c0_37, %c0_38, %c0_39] : memref<1x4x1xf32, #tpu.memory_space<vmem>>, vector<1x4x1xf32>
      tpu.vector_store %arg6[%c0_37, %c0_38, %c0_39], %41 {strides = array<i32>} : memref<1x4x1xf32, #tpu.memory_space<vmem>>, vector<1x4x1xf32>,
    } else {
    }
    %c0 = arith.constant 0 : index
    %c0_1 = arith.constant 0 : index
    %c0_2 = arith.constant 0 : index
    %3 = vector.load %arg2[%c0, %c0_1, %c0_2] : memref<1x4x256xf32, #tpu.memory_space<vmem>>, vector<1x4x256xf32>
    %cst = arith.constant dense<0xFF800000> : vector<1x256xf32>
    %4 = vector.multi_reduction <maximumf>, %3, %cst [1] : vector<1x4x256xf32> to vector<1x256xf32>
    %5 = vector.shape_cast %4 : vector<1x256xf32> to vector<1x1x256xf32>
    %6 = vector.broadcast %5 : vector<1x1x256xf32> to vector<1x4x256xf32>
    %7 = arith.subf %3, %6 : vector<1x4x256xf32>
    %8 = math.exp %7 : vector<1x4x256xf32>
    %cst_3 = arith.constant dense<0.000000e+00> : vector<1x256xf32>
    %9 = vector.multi_reduction <add>, %8, %cst_3 [1] : vector<1x4x256xf32> to vector<1x256xf32>
    %10 = vector.shape_cast %9 : vector<1x256xf32> to vector<1x1x256xf32>
    %11 = tpu.reciprocal %10 : vector<1x1x256xf32> -> vector<1x1x256xf32>
    %12 = vector.broadcast %11 : vector<1x1x256xf32> to vector<1x4x256xf32>
    %13 = arith.mulf %8, %12 : vector<1x4x256xf32>
    %14 = tpu.iota {dimensions = array<i32: 1>} : vector<1x4x1xi32>
    %c0_4 = arith.constant 0 : index
    %c0_5 = arith.constant 0 : index
    %c0_6 = arith.constant 0 : index
    %15 = vector.load %arg3[%c0_4, %c0_5, %c0_6] : memref<1x1x256xi32, #tpu.memory_space<vmem>>, vector<1x1x256xi32>
    %16 = vector.broadcast %15 : vector<1x1x256xi32> to vector<1x4x256xi32>
    %17 = vector.broadcast %14 : vector<1x4x1xi32> to vector<1x4x256xi32>
    %18 = arith.cmpi eq, %16, %17 : vector<1x4x256xi32>
    %19 = arith.extui %18 : vector<1x4x256xi1> to vector<1x4x256xi32>
    %20 = arith.sitofp %19 : vector<1x4x256xi32> to vector<1x4x256xf32>
    %c0_7 = arith.constant 0 : index
    %c0_8 = arith.constant 0 : index
    %c0_9 = arith.constant 0 : index
    %21 = vector.load %arg4[%c0_7, %c0_8, %c0_9] : memref<1x4x1xf32, #tpu.memory_space<vmem>>, vector<1x4x1xf32>
    %22 = arith.mulf %20, %13 : vector<1x4x256xf32>
    %cst_10 = arith.constant dense<0.000000e+00> : vector<1x4xf32>
    %23 = vector.multi_reduction <add>, %22, %cst_10 [2] : vector<1x4x256xf32> to vector<1x4xf32>
    %24 = vector.shape_cast %23 : vector<1x4xf32> to vector<1x4x1xf32>
    %25 = arith.addf %21, %24 : vector<1x4x1xf32>
    %c0_11 = arith.constant 0 : index
    %c0_12 = arith.constant 0 : index
    %c0_13 = arith.constant 0 : index
    %26 = vector.load %arg4[%c0_11, %c0_12, %c0_13] : memref<1x4x1xf32, #tpu.memory_space<vmem>>, vector<1x4x1xf32>
    tpu.vector_store %arg4[%c0_11, %c0_12, %c0_13], %25 {strides = array<i32>} : memref<1x4x1xf32, #tpu.memory_space<vmem>>, vector<1x4x1xf32>,
    %c0_14 = arith.constant 0 : index
    %c0_15 = arith.constant 0 : index
    %c0_16 = arith.constant 0 : index
    %27 = vector.load %arg5[%c0_14, %c0_15, %c0_16] : memref<1x4x1xf32, #tpu.memory_space<vmem>>, vector<1x4x1xf32>
    %cst_17 = arith.constant dense<0.000000e+00> : vector<1x4xf32>
    %28 = vector.multi_reduction <add>, %13, %cst_17 [2] : vector<1x4x256xf32> to vector<1x4xf32>
    %29 = vector.shape_cast %28 : vector<1x4xf32> to vector<1x4x1xf32>
    %30 = arith.addf %27, %29 : vector<1x4x1xf32>
    %c0_18 = arith.constant 0 : index
    %c0_19 = arith.constant 0 : index
    %c0_20 = arith.constant 0 : index
    %31 = vector.load %arg5[%c0_18, %c0_19, %c0_20] : memref<1x4x1xf32, #tpu.memory_space<vmem>>, vector<1x4x1xf32>
    tpu.vector_store %arg5[%c0_18, %c0_19, %c0_20], %30 {strides = array<i32>} : memref<1x4x1xf32, #tpu.memory_space<vmem>>, vector<1x4x1xf32>,
    %c0_21 = arith.constant 0 : index
    %c0_22 = arith.constant 0 : index
    %c0_23 = arith.constant 0 : index
    %32 = vector.load %arg6[%c0_21, %c0_22, %c0_23] : memref<1x4x1xf32, #tpu.memory_space<vmem>>, vector<1x4x1xf32>
    %cst_24 = arith.constant dense<0.000000e+00> : vector<1x4xf32>
    %33 = vector.multi_reduction <add>, %20, %cst_24 [2] : vector<1x4x256xf32> to vector<1x4xf32>
    %34 = vector.shape_cast %33 : vector<1x4xf32> to vector<1x4x1xf32>
    %35 = arith.addf %32, %34 : vector<1x4x1xf32>
    %c0_25 = arith.constant 0 : index
    %c0_26 = arith.constant 0 : index
    %c0_27 = arith.constant 0 : index
    %36 = vector.load %arg6[%c0_25, %c0_26, %c0_27] : memref<1x4x1xf32, #tpu.memory_space<vmem>>, vector<1x4x1xf32>
    tpu.vector_store %arg6[%c0_25, %c0_26, %c0_27], %35 {strides = array<i32>} : memref<1x4x1xf32, #tpu.memory_space<vmem>>, vector<1x4x1xf32>,
    return
  }
  func.func @transform_0(%arg0: i32, %arg1: i32) -> (i32, i32, i32) {
    %c0_i32 = arith.constant 0 : i32
    %c0_i32_0 = arith.constant 0 : i32
    return %arg0, %c0_i32, %arg1 : i32, i32, i32
  }
  func.func @transform_1(%arg0: i32, %arg1: i32) -> (i32, i32, i32) {
    %c0_i32 = arith.constant 0 : i32
    %c0_i32_0 = arith.constant 0 : i32
    return %arg0, %c0_i32, %arg1 : i32, i32, i32
  }
  func.func @transform_2(%arg0: i32, %arg1: i32) -> (i32, i32, i32) {
    %c0_i32 = arith.constant 0 : i32
    %c0_i32_0 = arith.constant 0 : i32
    %c0_i32_1 = arith.constant 0 : i32
    return %arg0, %c0_i32, %c0_i32_0 : i32, i32, i32
  }
  func.func @transform_3(%arg0: i32, %arg1: i32) -> (i32, i32, i32) {
    %c0_i32 = arith.constant 0 : i32
    %c0_i32_0 = arith.constant 0 : i32
    %c0_i32_1 = arith.constant 0 : i32
    return %arg0, %c0_i32, %c0_i32_0 : i32, i32, i32
  }
  func.func @transform_4(%arg0: i32, %arg1: i32) -> (i32, i32, i32) {
    %c0_i32 = arith.constant 0 : i32
    %c0_i32_0 = arith.constant 0 : i32
    %c0_i32_1 = arith.constant 0 : i32
    return %arg0, %c0_i32, %c0_i32_0 : i32, i32, i32
  }
}

</mosaic_0001>

<llo_original>
// kernel: weighted_dice_loss.1
$region0: #{weighted_dice_loss.1}
  #allocation0 [shape = 'u32[]', space=smem, size = 0x4, offset = 0x4, fixed_abs, tag = 'smem constant byte address 0x4 - core index']
  #allocation1 [shape = 'u32[144,128]{1,0:T(1,128)}', space=vmem, size = 0x12000, scoped, tag = 'internal scratch']
  %s0 = inlined_call_operand.vmem [shape: f32[2,4,256], index: 0, kind: input, shape index: {}]
  %s1 = inlined_call_operand.vmem [shape: s32[2,1,256], index: 1, kind: input, shape index: {}]
  %s2 = inlined_call_operand.vmem [shape: f32[2,4,1], index: 2, kind: output, shape index: {0}]
  %s3 = inlined_call_operand.vmem [shape: f32[2,4,1], index: 3, kind: output, shape index: {1}]
  %s4 = inlined_call_operand.vmem [shape: f32[2,4,1], index: 4, kind: output, shape index: {2}]
  %5 = xla_tuple %s2, %s3, %s4
  %s6 = sld [smem:[#allocation0]]
  $region61: #{weighted_dice_loss.1} parent=0
    _
  %s8 = ssub.s32 1, %s6
  %s9 = scalar_select 0, %s8, %s6
  loop: start=0, step=1, limit=4
  $region2: #{weighted_dice_loss.1} parent=0 // loop_pre_header
    _
  $region3: #{weighted_dice_loss.1} parent=0 // loop_header
    %s11 = sphi 0, %s15
    %p12 = scmp.ge.s32.totalorder %s11, 4
    %s18 = sphi 0, %s30
    %s19 = sphi 0, %s26
    %s20 = sphi 0, %s18
    %s21 = sphi 0, %s19
    %s22 = sphi 0, %s20
    %s23 = sphi 0, %s21
    %s35 = sphi 0, %s37
    %s38 = sphi 0, %s35
    %s39 = sphi 0, %s38
    %s55 = sphi 0, %s39
    %s63 = sphi 0, %s65
    %s66 = sphi 0, %s63
    %s67 = sphi 0, %s66
    %s83 = sphi 0, %s67
    %s89 = sphi 0, %s91
    %s92 = sphi 0, %s89
    %s93 = sphi 0, %s92
    %s109 = sphi 0, %s93
    %s115 = sphi 0, %s117
    %s118 = sphi 0, %s115
    %s119 = sphi 0, %s118
    %s135 = sphi 0, %s119
    %s141 = sphi 0, %s143
    %s144 = sphi 0, %s141
    %s145 = sphi 0, %s144
    %s161 = sphi 0, %s145
  $region4: #{weighted_dice_loss.1} parent=0 // loop_header_branch
    %14 = sbr.rel (%p12) target = $region8
  $region5: #{weighted_dice_loss.1} parent=0 // loop_body
    %s16 = ssub.s32 %s11, 1
    %s17 = ssub.s32 %s11, 2
    %s24 = sadd.s32 1, %s19
    %p25 = scmp.ge.s32.totalorder %s24, 1
    %s26 = scalar_select %p25, 0, %s24
    %s27 = sadd.s32 1, %s18
    %s28 = scalar_select %p25, %s27, %s18
    %p29 = scmp.ge.s32.totalorder %s28, 2
    %s30 = scalar_select %p29, 0, %s28
    %s31 = ssub.s32 %s18, %s30
    %s32 = ssub.s32 %s19, %s26
    %s33 = sor.u32 %s31, %s32
    %p34 = scmp.eq.s32.totalorder %s33, 0
    %s36 = sadd.s32 %s35, 1
    %s37 = scalar_select %p34, %s35, %s36
    %p40 = pneg %p34
    %p41 = scmp.eq.s32.totalorder %s11, 1
    %p42 = por %p40, %p41
    %p43 = scmp.ne.s32.totalorder %s35, %s38
    %p44 = scmp.eq.s32.totalorder %s11, 0
    %p45 = por %p43, %p44
    %p46 = scmp.ne.s32.totalorder %s35, %s38
    %p47 = scmp.eq.s32.totalorder %s16, 1
    %p48 = por %p46, %p47
    %p49 = scmp.ne.s32.totalorder %s38, %s39
    %p50 = scmp.eq.s32.totalorder %s16, 0
    %p51 = por %p49, %p50
    %p52 = scmp.ne.s32.totalorder %s38, %s39
    %p53 = scmp.eq.s32.totalorder %s17, 1
    %p54 = por %p52, %p53
    %p56 = scmp.ne.s32.totalorder %s39, %s55
    %p57 = scmp.eq.s32.totalorder %s17, 0
    %p58 = por %p56, %p57
    %s59 = ssub.s32 %s18, %s30
    %s60 = ssub.s32 %s19, %s26
    %s61 = sor.u32 %s59, %s60
    %p62 = scmp.eq.s32.totalorder %s61, 0
    %s64 = sadd.s32 %s63, 1
    %s65 = scalar_select %p62, %s63, %s64
    %p68 = pneg %p62
    %p69 = scmp.eq.s32.totalorder %s11, 1
    %p70 = por %p68, %p69
    %p71 = scmp.ne.s32.totalorder %s63, %s66
    %p72 = scmp.eq.s32.totalorder %s11, 0
    %p73 = por %p71, %p72
    %p74 = scmp.ne.s32.totalorder %s63, %s66
    %p75 = scmp.eq.s32.totalorder %s16, 1
    %p76 = por %p74, %p75
    %p77 = scmp.ne.s32.totalorder %s66, %s67
    %p78 = scmp.eq.s32.totalorder %s16, 0
    %p79 = por %p77, %p78
    %p80 = scmp.ne.s32.totalorder %s66, %s67
    %p81 = scmp.eq.s32.totalorder %s17, 1
    %p82 = por %p80, %p81
    %p84 = scmp.ne.s32.totalorder %s67, %s83
    %p85 = scmp.eq.s32.totalorder %s17, 0
    %p86 = por %p84, %p85
    %s87 = ssub.s32 %s18, %s30
    %p88 = scmp.eq.s32.totalorder %s87, 0
    %s90 = sadd.s32 %s89, 1
    %s91 = scalar_select %p88, %s89, %s90
    %p94 = pneg %p88
    %p95 = scmp.eq.s32.totalorder %s11, 1
    %p96 = por %p94, %p95
    %p97 = scmp.ne.s32.totalorder %s89, %s92
    %p98 = scmp.eq.s32.totalorder %s11, 0
    %p99 = por %p97, %p98
    %p100 = scmp.ne.s32.totalorder %s89, %s92
    %p101 = scmp.eq.s32.totalorder %s16, 1
    %p102 = por %p100, %p101
    %p103 = scmp.ne.s32.totalorder %s92, %s93
    %p104 = scmp.eq.s32.totalorder %s16, 0
    %p105 = por %p103, %p104
    %p106 = scmp.ne.s32.totalorder %s92, %s93
    %p107 = scmp.eq.s32.totalorder %s17, 1
    %p108 = por %p106, %p107
    %p110 = scmp.ne.s32.totalorder %s93, %s109
    %p111 = scmp.eq.s32.totalorder %s17, 0
    %p112 = por %p110, %p111
    %s113 = ssub.s32 %s18, %s30
    %p114 = scmp.eq.s32.totalorder %s113, 0
    %s116 = sadd.s32 %s115, 1
    %s117 = scalar_select %p114, %s115, %s116
    %p120 = pneg %p114
    %p121 = scmp.eq.s32.totalorder %s11, 1
    %p122 = por %p120, %p121
    %p123 = scmp.ne.s32.totalorder %s115, %s118
    %p124 = scmp.eq.s32.totalorder %s11, 0
    %p125 = por %p123, %p124
    %p126 = scmp.ne.s32.totalorder %s115, %s118
    %p127 = scmp.eq.s32.totalorder %s16, 1
    %p128 = por %p126, %p127
    %p129 = scmp.ne.s32.totalorder %s118, %s119
    %p130 = scmp.eq.s32.totalorder %s16, 0
    %p131 = por %p129, %p130
    %p132 = scmp.ne.s32.totalorder %s118, %s119
    %p133 = scmp.eq.s32.totalorder %s17, 1
    %p134 = por %p132, %p133
    %p136 = scmp.ne.s32.totalorder %s119, %s135
    %p137 = scmp.eq.s32.totalorder %s17, 0
    %p138 = por %p136, %p137
    %s139 = ssub.s32 %s18, %s30
    %p140 = scmp.eq.s32.totalorder %s139, 0
    %s142 = sadd.s32 %s141, 1
    %s143 = scalar_select %p140, %s141, %s142
    %p146 = pneg %p140
    %p147 = scmp.eq.s32.totalorder %s11, 1
    %p148 = por %p146, %p147
    %p149 = scmp.ne.s32.totalorder %s141, %s144
    %p150 = scmp.eq.s32.totalorder %s11, 0
    %p151 = por %p149, %p150
    %p152 = scmp.ne.s32.totalorder %s141, %s144
    %p153 = scmp.eq.s32.totalorder %s16, 1
    %p154 = por %p152, %p153
    %p155 = scmp.ne.s32.totalorder %s144, %s145
    %p156 = scmp.eq.s32.totalorder %s16, 0
    %p157 = por %p155, %p156
    %p158 = scmp.ne.s32.totalorder %s144, %s145
    %p159 = scmp.eq.s32.totalorder %s17, 1
    %p160 = por %p158, %p159
    %p162 = scmp.ne.s32.totalorder %s145, %s161
    %p163 = scmp.eq.s32.totalorder %s17, 0
    %p164 = por %p162, %p163
    %p165 = scmp.le.s32.totalorder 1, %s11
    %p166 = scmp.lt.s32.totalorder %s11, 3
    %p167 = pnand %p165, %p166
    %p168 = pneg %p167
    // Predicated region
    $region9: #{weighted_dice_loss.1} parent=5 // pred_check
      _
    $region10: #{weighted_dice_loss.1} parent=5 // pred_check_branch
      %170 = sbr.rel (%p167) target = $region12
    $region11: #{weighted_dice_loss.1} parent=5 // pred_region
      %s171 = ssub.s32 %s11, 1
    $region12: #{weighted_dice_loss.1} parent=5 // pred_fallthru
      _
    %p172 = scmp.lt.s32.totalorder %s11, 2
    // Predicated region
    $region13: #{weighted_dice_loss.1} parent=5 // pred_check
      %p173 = pneg %p172
    $region14: #{weighted_dice_loss.1} parent=5 // pred_check_branch
      %175 = sbr.rel (%p173) target = $region16
    $region15: #{weighted_dice_loss.1} parent=5 // pred_region
      // Predicated region
      $region17: #{weighted_dice_loss.1} parent=15 // pred_check
        %p176 = pneg %p45
      $region18: #{weighted_dice_loss.1} parent=15 // pred_check_branch
        %178 = sbr.rel (%p176) target = $region20
      $region19: #{weighted_dice_loss.1} parent=15 // pred_region
        %s179 = smul.u32 2, %s19
        %p180 = scmp.lt.s32.totalorder %s18, 1
        %s181 = scalar_select %p180, %s18, 1
        %p182 = scmp.lt.s32.totalorder %s179, 1
        %s183 = scalar_select %p182, %s179, 1
        %s184 = smul.addr %s181, 2
        %s185 = sadd.s32 %s183, %s184
        %s186 = smul.addr %s185, 4
        %s187 = scalar_lea.vmem %s0, %s186
        %s188 = smul.u32 2, %s19
      $region20: #{weighted_dice_loss.1} parent=15 // pred_fallthru
        _
      // Predicated region
      $region21: #{weighted_dice_loss.1} parent=15 // pred_check
        %p189 = pneg %p73
      $region22: #{weighted_dice_loss.1} parent=15 // pred_check_branch
        %191 = sbr.rel (%p189) target = $region24
      $region23: #{weighted_dice_loss.1} parent=15 // pred_region
        %s192 = smul.u32 2, %s19
        %p193 = scmp.lt.s32.totalorder %s18, 1
        %s194 = scalar_select %p193, %s18, 1
        %p195 = scmp.lt.s32.totalorder %s192, 1
        %s196 = scalar_select %p195, %s192, 1
        %s197 = smul.addr %s194, 2
        %s198 = sadd.s32 %s196, %s197
        %s199 = scalar_lea.vmem %s1, %s198
        %s200 = smul.u32 2, %s19
      $region24: #{weighted_dice_loss.1} parent=15 // pred_fallthru
        _
    $region16: #{weighted_dice_loss.1} parent=5 // pred_fallthru
      _
    %p201 = scmp.le.s32.totalorder 1, %s11
    %p202 = scmp.lt.s32.totalorder %s11, 3
    %p203 = pnand %p201, %p202
    %p204 = pneg %p203
    // Predicated region
    $region25: #{weighted_dice_loss.1} parent=5 // pred_check
      _
    $region26: #{weighted_dice_loss.1} parent=5 // pred_check_branch
      %206 = sbr.rel (%p203) target = $region28
    $region27: #{weighted_dice_loss.1} parent=5 // pred_region
      %s207 = ssub.s32 %s11, 1
      %s208 = smul.u32 2, %s21
      %p209 = scmp.lt.s32.totalorder %s20, 1
      %s210 = scalar_select %p209, %s20, 1
      %p211 = scmp.lt.s32.totalorder %s208, 1
      %s212 = scalar_select %p211, %s208, 1
      %s213 = smul.addr %s210, 2
      %s214 = sadd.s32 %s212, %s213
      %s215 = smul.addr %s214, 4
      %s216 = scalar_lea.vmem %s0, %s215
      %p217 = pneg %p51
      %p218 = pneg %p48
      %s219 = smul.u32 2, %s21
      %p220 = scmp.lt.s32.totalorder %s20, 1
      %s221 = scalar_select %p220, %s20, 1
      %p222 = scmp.lt.s32.totalorder %s219, 1
      %s223 = scalar_select %p222, %s219, 1
      %s224 = smul.addr %s221, 2
      %s225 = sadd.s32 %s223, %s224
      %s226 = scalar_lea.vmem %s1, %s225
      %p227 = pneg %p79
      %p228 = pneg %p76
      %p229 = pneg %p105
      %p230 = pneg %p102
      %p231 = scmp.lt.s32.totalorder %s20, 1
      %s232 = scalar_select %p231, %s20, 1
      %s233 = smul.addr %s232, 4
      %s234 = scalar_lea.vmem %s2, %s233
      %p235 = pneg %p131
      %p236 = pneg %p128
      %p237 = scmp.lt.s32.totalorder %s20, 1
      %s238 = scalar_select %p237, %s20, 1
      %s239 = smul.addr %s238, 4
      %s240 = scalar_lea.vmem %s3, %s239
      %p241 = pneg %p157
      %p242 = pneg %p154
      %p243 = scmp.lt.s32.totalorder %s20, 1
      %s244 = scalar_select %p243, %s20, 1
      %s245 = smul.addr %s244, 4
      %s246 = scalar_lea.vmem %s4, %s245
      %s247 = smul.u32 2, %s21
      %p248 = scmp.lt.s32.totalorder %s20, 1
      %s249 = scalar_select %p248, %s20, 1
      %p250 = scmp.lt.s32.totalorder %s247, 1
      %s251 = scalar_select %p250, %s247, 1
      %s252 = smul.addr %s249, 2
      %s253 = sadd.s32 %s251, %s252
      %s254 = smul.addr %s253, 4
      %s255 = scalar_lea.vmem %s0, %s254
      %s256 = smul.u32 2, %s21
      %s257 = smul.u32 2, %s21
      %p258 = scmp.lt.s32.totalorder %s20, 1
      %s259 = scalar_select %p258, %s20, 1
      %p260 = scmp.lt.s32.totalorder %s257, 1
      %s261 = scalar_select %p260, %s257, 1
      %s262 = smul.addr %s259, 2
      %s263 = sadd.s32 %s261, %s262
      %s264 = scalar_lea.vmem %s1, %s263
      %s265 = smul.u32 2, %s21
      %p266 = scmp.lt.s32.totalorder %s20, 1
      %s267 = scalar_select %p266, %s20, 1
      %s268 = smul.addr %s267, 4
      %s269 = scalar_lea.vmem %s2, %s268
      %p270 = scmp.lt.s32.totalorder %s20, 1
      %s271 = scalar_select %p270, %s20, 1
      %s272 = smul.addr %s271, 4
      %s273 = scalar_lea.vmem %s3, %s272
      %p274 = scmp.lt.s32.totalorder %s20, 1
      %s275 = scalar_select %p274, %s20, 1
      %s276 = smul.addr %s275, 4
      %s277 = scalar_lea.vmem %s4, %s276
      %p278 = scmp.eq.s32.totalorder %s21, 0
      // Predicated region
      $region29: #{weighted_dice_loss.1} parent=27 // pred_check
        %p279 = pneg %p278
      $region30: #{weighted_dice_loss.1} parent=27 // pred_check_branch
        %281 = sbr.rel (%p279) target = $region32
      $region31: #{weighted_dice_loss.1} parent=27 // pred_region
        %vm282 = vcmask 3072
        %283 = vst.msk [vmem:[%s269] sm:$0xf] %vm282, 0.0
        %284 = vst.msk [vmem:[%s273] sm:$0xf] %vm282, 0.0
        %285 = vst.msk [vmem:[%s277] sm:$0xf] %vm282, 0.0
      $region32: #{weighted_dice_loss.1} parent=27 // pred_fallthru
        _
      %v286 = vld [vmem:[%s255] sm:$0xff]
      %v288 = vcombine.high %v286, %v286
      %vm290 = vcmask 1043456
      %v291 = vsel %vm290, %v286, -inf
      %v292 = vrot.slane %v291, 4
      %v293 = vmax.f32 %v291, %v292
      %v294 = vrot.slane %v293, 2
      %v295 = vmax.f32 %v293, %v294
      %v296 = vrot.slane %v295, 1
      %v297 = vmax.f32 %v295, %v296
      %v298 = vsel %vm290, %v288, -inf
      %v299 = vrot.slane %v298, 4
      %v300 = vmax.f32 %v298, %v299
      %v301 = vrot.slane %v300, 2
      %v302 = vmax.f32 %v300, %v301
      %v303 = vrot.slane %v302, 1
      %v304 = vmax.f32 %v302, %v303
      %v307 = vcombine.low %v297, %v304
      %v309 = vsub.f32 %v286, %v307
      %v310 = vmul.f32 %v309, 1.442695
      %v311 = vpow.pop %v310
      %v313 = vcombine.high %v311, %v311
      %v315 = vsel %vm290, %v311, 0.0
      %v316 = vrot.slane %v315, 4
      %v317 = vadd.f32 %v315, %v316
      %v318 = vrot.slane %v317, 2
      %v319 = vadd.f32 %v317, %v318
      %v320 = vrot.slane %v319, 1
      %v321 = vadd.f32 %v319, %v320
      %v322 = vsel %vm290, %v313, 0.0
      %v323 = vrot.slane %v322, 4
      %v324 = vadd.f32 %v322, %v323
      %v325 = vrot.slane %v324, 2
      %v326 = vadd.f32 %v324, %v325
      %v327 = vrot.slane %v326, 1
      %v328 = vadd.f32 %v326, %v327
      %v329 = vrcp.pop %v321
      %v330 = vrcp.pop %v328
      %v333 = vcombine.low %v329, %v330
      %v335 = vmul.f32 %v311, %v333
      %v336 = vlaneseq
      %v337 = vshrl.u32 %v336, 7
      %v338 = vld [vmem:[%s264] sm:$0x3]
      %v339 = vlaneseq
      %v340 = vshrl.u32 %v339, 7
      %v341 = vsub.s32 0, %v340
      %v342 = vrot.slane %v338, %v341
      %v343 = vlaneseq
      %v344 = vshrl.u32 %v343, 7
      %v345 = vsub.s32 1, %v344
      %v346 = vrot.slane %v338, %v345
      %vm347 = vcmp.eq.s32.totalorder %v342, %v337
      %vm348 = vcmp.eq.s32.totalorder %v346, %v337
      %v349 = vsel %vm347, 1, 0
      %v350 = vsel %vm348, 1, 0
      %v351 = vcvt.s32.f32 %v349
      %v352 = vcvt.s32.f32 %v350
      %v353 = vld [vmem:[%s269] sm:$0xf]
      %v355 = vcombine.high %v335, %v335
      %v357 = vmul.f32 %v351, %v335
      %v358 = vmul.f32 %v352, %v355
      %v359 = vsel %vm290, %v357, 0.0
      %v360 = vsel %vm290, %v358, 0.0
      %v361 = vadd.f32 %v359, %v360
      %362 = vadd.xlane.f32.xlu0 %v361
      %v363 = vpop.xlane.xlu0 %362
      %v364 = vadd.f32 %v353, %v363
      %vm365 = vcmask 3072
      %366 = vst.msk [vmem:[%s269] sm:$0xf] %vm365, %v364
      %v367 = vld [vmem:[%s273] sm:$0xf]
      %v368 = vsel %vm290, %v335, 0.0
      %v369 = vsel %vm290, %v355, 0.0
      %v370 = vadd.f32 %v368, %v369
      %371 = vadd.xlane.f32.xlu0 %v370
      %v372 = vpop.xlane.xlu0 %371
      %v373 = vadd.f32 %v367, %v372
      %374 = vst.msk [vmem:[%s273] sm:$0xf] %vm365, %v373
      %v375 = vld [vmem:[%s277] sm:$0xf]
      %v376 = vsel %vm290, %v351, 0.0
      %v377 = vsel %vm290, %v352, 0.0
      %v378 = vadd.f32 %v376, %v377
      %379 = vadd.xlane.f32.xlu0 %v378
      %v380 = vpop.xlane.xlu0 %379
      %v381 = vadd.f32 %v375, %v380
      %382 = vst.msk [vmem:[%s277] sm:$0xf] %vm365, %v381
      %p383 = scmp.lt.s32.totalorder %s20, 1
      %s384 = scalar_select %p383, %s20, 1
      %s385 = smul.addr %s384, 4
      %s386 = scalar_lea.vmem %s2, %s385
      %p387 = scmp.lt.s32.totalorder %s20, 1
      %s388 = scalar_select %p387, %s20, 1
      %s389 = smul.addr %s388, 4
      %s390 = scalar_lea.vmem %s3, %s389
      %p391 = scmp.lt.s32.totalorder %s20, 1
      %s392 = scalar_select %p391, %s20, 1
      %s393 = smul.addr %s392, 4
      %s394 = scalar_lea.vmem %s4, %s393
      // Predicated region
      $region33: #{weighted_dice_loss.1} parent=27 // pred_check
        %p395 = pneg %p102
      $region34: #{weighted_dice_loss.1} parent=27 // pred_check_branch
        %397 = sbr.rel (%p395) target = $region36
      $region35: #{weighted_dice_loss.1} parent=27 // pred_region
        _
      $region36: #{weighted_dice_loss.1} parent=27 // pred_fallthru
        _
      // Predicated region
      $region37: #{weighted_dice_loss.1} parent=27 // pred_check
        %p398 = pneg %p128
      $region38: #{weighted_dice_loss.1} parent=27 // pred_check_branch
        %400 = sbr.rel (%p398) target = $region40
      $region39: #{weighted_dice_loss.1} parent=27 // pred_region
        _
      $region40: #{weighted_dice_loss.1} parent=27 // pred_fallthru
        _
      // Predicated region
      $region41: #{weighted_dice_loss.1} parent=27 // pred_check
        %p401 = pneg %p154
      $region42: #{weighted_dice_loss.1} parent=27 // pred_check_branch
        %403 = sbr.rel (%p401) target = $region44
      $region43: #{weighted_dice_loss.1} parent=27 // pred_region
        _
      $region44: #{weighted_dice_loss.1} parent=27 // pred_fallthru
        _
    $region28: #{weighted_dice_loss.1} parent=5 // pred_fallthru
      _
    %p404 = scmp.le.s32.totalorder 2, %s11
    // Predicated region
    $region45: #{weighted_dice_loss.1} parent=5 // pred_check
      %p405 = pneg %p404
    $region46: #{weighted_dice_loss.1} parent=5 // pred_check_branch
      %407 = sbr.rel (%p405) target = $region48
    $region47: #{weighted_dice_loss.1} parent=5 // pred_region
      %s408 = ssub.s32 %s11, 2
      // Predicated region
      $region49: #{weighted_dice_loss.1} parent=47 // pred_check
        %p409 = pneg %p108
      $region50: #{weighted_dice_loss.1} parent=47 // pred_check_branch
        %411 = sbr.rel (%p409) target = $region52
      $region51: #{weighted_dice_loss.1} parent=47 // pred_region
        %p412 = scmp.lt.s32.totalorder %s22, 1
        %s413 = scalar_select %p412, %s22, 1
        %s414 = smul.addr %s413, 4
        %s415 = scalar_lea.vmem %s2, %s414
      $region52: #{weighted_dice_loss.1} parent=47 // pred_fallthru
        _
      // Predicated region
      $region53: #{weighted_dice_loss.1} parent=47 // pred_check
        %p416 = pneg %p134
      $region54: #{weighted_dice_loss.1} parent=47 // pred_check_branch
        %418 = sbr.rel (%p416) target = $region56
      $region55: #{weighted_dice_loss.1} parent=47 // pred_region
        %p419 = scmp.lt.s32.totalorder %s22, 1
        %s420 = scalar_select %p419, %s22, 1
        %s421 = smul.addr %s420, 4
        %s422 = scalar_lea.vmem %s3, %s421
      $region56: #{weighted_dice_loss.1} parent=47 // pred_fallthru
        _
      // Predicated region
      $region57: #{weighted_dice_loss.1} parent=47 // pred_check
        %p423 = pneg %p160
      $region58: #{weighted_dice_loss.1} parent=47 // pred_check_branch
        %425 = sbr.rel (%p423) target = $region60
      $region59: #{weighted_dice_loss.1} parent=47 // pred_region
        %p426 = scmp.lt.s32.totalorder %s22, 1
        %s427 = scalar_select %p426, %s22, 1
        %s428 = smul.addr %s427, 4
        %s429 = scalar_lea.vmem %s4, %s428
      $region60: #{weighted_dice_loss.1} parent=47 // pred_fallthru
        _
    $region48: #{weighted_dice_loss.1} parent=5 // pred_fallthru
      _
  $region6: #{weighted_dice_loss.1} parent=0 // loop_footer
    %s15 = sadd.s32 1, %s11
  $region7: #{weighted_dice_loss.1} parent=0 // loop_footer_branch
    %10 = sbr.rel target = $region3
  $region8: #{weighted_dice_loss.1} parent=0 // loop_exit
    _

</llo_original>
